<compile_context>
chip_gen: v7x
topology: tpu7x:2x2x1
jax: 0.10.0
libtpu: 0.0.40
codegen_flags: <defaults>
</compile_context>

<pallas_src>
import functools

import jax
import jax.numpy as jnp
from jax.experimental import pallas as pl
from jax.experimental.pallas import tpu as pltpu


def _round_up(x, m):
    return ((x + m - 1) // m) * m


def _log_sigmoid(x):
    # numerically stable log-sigmoid (matches torch.nn.LogSigmoid)
    return jnp.minimum(x, 0.0) - jnp.log1p(jnp.exp(-jnp.abs(x)))


# ----------------------------------------------------------------------------
# Kernel 1: batched BPR / CG-BPR / L2 partial sums over dense gathered tiles.
# grid = (n_par, steps_per_core); each step processes a (TB, D) tile of the
# nine gathered (B, D) arrays.  Per-core accumulator block (1, 8, 128),
# lanes 0/1/2 of sublane 0 hold the bpr / cg / reg partial sums.
# ----------------------------------------------------------------------------
def _batch_loss_kernel(B, TB, spc,
                       u_kg_ref, u_cg_ref, u_pf_ref,
                       i_kg_ref, i_cg_ref, i_at_ref,
                       n_kg_ref, n_cg_ref, n_at_ref,
                       acc_ref):
    c = pl.program_id(0)
    s = pl.program_id(1)

    @pl.when(s == 0)
    def _():
        acc_ref[...] = jnp.zeros_like(acc_ref)

    f32 = jnp.float32
    u_kg = u_kg_ref[...].astype(f32)      # (TB, D)
    u_cg = u_cg_ref[...].astype(f32)
    u_pf = u_pf_ref[...].astype(f32)
    i_kg = i_kg_ref[...].astype(f32)
    i_cg = i_cg_ref[...].astype(f32)
    i_at = i_at_ref[...].astype(f32)
    n_kg = n_kg_ref[...].astype(f32)
    n_cg = n_cg_ref[...].astype(f32)
    n_at = n_at_ref[...].astype(f32)

    # user_total = concat((pref+cg)/2, kg); item_total = concat((cg+attn)/2, kg)
    # dot over the concatenation = sum of the two half dot-products.
    user_half = (u_pf + u_cg) * 0.5
    item_half = (i_cg + i_at) * 0.5
    nitm_half = (n_cg + n_at) * 0.5

    pos = jnp.sum(user_half * item_half + u_kg * i_kg, axis=1, keepdims=True)   # (TB,1)
    neg = jnp.sum(user_half * nitm_half + u_kg * n_kg, axis=1, keepdims=True)
    bpr_t = -_log_sigmoid(pos - neg)

    pos_cg = jnp.sum(u_cg * i_cg, axis=1, keepdims=True)
    neg_cg = jnp.sum(u_cg * n_cg, axis=1, keepdims=True)
    cg_t = -_log_sigmoid(pos_cg - neg_cg)

    sq = (u_kg * u_kg + u_cg * u_cg + u_pf * u_pf
          + i_kg * i_kg + i_cg * i_cg + i_at * i_at
          + n_kg * n_kg + n_cg * n_cg + n_at * n_at)
    reg_t = 0.5 * jnp.sum(sq, axis=1, keepdims=True)

    # mask rows that belong to batch padding
    row0 = (c * spc + s) * TB
    rid = jax.lax.broadcasted_iota(jnp.int32, (TB, 1), 0) + row0
    valid = rid < B
    bpr_s = jnp.sum(jnp.where(valid, bpr_t, 0.0))
    cg_s = jnp.sum(jnp.where(valid, cg_t, 0.0))
    reg_s = jnp.sum(jnp.where(valid, reg_t, 0.0))

    sub = jax.lax.broadcasted_iota(jnp.int32, acc_ref.shape, 1)
    lane = jax.lax.broadcasted_iota(jnp.int32, acc_ref.shape, 2)
    r0 = sub == 0
    contrib = jnp.where(r0 & (lane == 0), bpr_s,
              jnp.where(r0 & (lane == 1), cg_s,
              jnp.where(r0 & (lane == 2), reg_s, 0.0)))
    acc_ref[...] = acc_ref[...] + contrib


def batch_loss_sums(user_ids, item_ids, neg_item_ids,
                    user_kg_tbl, user_cg_tbl, pref_tbl,
                    entity_tbl, item_cg_tbl, item_attn_tbl):
    B = int(user_ids.shape[0])
    D = int(entity_tbl.shape[1])
    itemsize = jnp.dtype(entity_tbl.dtype).itemsize

    # Tile rows per step: lane-padded footprint of 9 inputs x 2 pipeline
    # buffers kept under ~18 MiB (safe against v7x's 64 MiB physical VMEM).
    padded_D = _round_up(D, 128)
    row_bytes = padded_D * itemsize
    TB = (18 << 20) // (18 * row_bytes)
    TB = max(8, min(2048, (TB // 8) * 8))
    TB = min(TB, _round_up(B, 8))

    n_tiles = pl.cdiv(B, TB)
    n_par = 2 if n_tiles >= 2 else 1          # use both v7x TensorCores
    spc = pl.cdiv(n_tiles, n_par)             # steps per core
    padded_B = n_par * spc * TB

    def pad_ids(ids):
        ids = ids.astype(jnp.int32)
        return jnp.pad(ids, (0, padded_B - B))   # pad with a valid index (0)

    uid, iid, nid = pad_ids(user_ids), pad_ids(item_ids), pad_ids(neg_item_ids)

    # Dense gathers in the wrapper (efficient XLA DMA gather) -> nine (padded_B, D).
    gathered = [
        jnp.take(user_kg_tbl, uid, axis=0),
        jnp.take(user_cg_tbl, uid, axis=0),
        jnp.take(pref_tbl, uid, axis=0),
        jnp.take(entity_tbl, iid, axis=0),
        jnp.take(item_cg_tbl, iid, axis=0),
        jnp.take(item_attn_tbl, iid, axis=0),
        jnp.take(entity_tbl, nid, axis=0),
        jnp.take(item_cg_tbl, nid, axis=0),
        jnp.take(item_attn_tbl, nid, axis=0),
    ]

    in_spec = pl.BlockSpec((TB, D), lambda c, s: (c * spc + s, 0))
    out_spec = pl.BlockSpec((1, 8, 128), lambda c, s: (c, 0, 0))
    kernel = functools.partial(_batch_loss_kernel, B, TB, spc)

    out = pl.pallas_call(
        kernel,
        out_shape=jax.ShapeDtypeStruct((n_par, 8, 128), jnp.float32),
        grid_spec=pltpu.PrefetchScalarGridSpec(
            num_scalar_prefetch=0,
            grid=(n_par, spc),
            in_specs=[in_spec] * 9,
            out_specs=out_spec,
        ),
        compiler_params=pltpu.CompilerParams(
            dimension_semantics=("parallel", "arbitrary"),
            vmem_limit_bytes=48 << 20),
    )(*gathered)

    bpr_sum = jnp.sum(out[:, 0, 0])
    cg_sum = jnp.sum(out[:, 0, 1])
    reg_sum = jnp.sum(out[:, 0, 2])
    return bpr_sum, cg_sum, reg_sum


# ----------------------------------------------------------------------------
# Kernel 2: InfoNCE-style contrastive sum (_constrast_loss), row-tiled,
# reduced in-kernel into a per-core resident accumulator block.
# ----------------------------------------------------------------------------
def _contrast_kernel(inv_tau, n_rows, tile, spc,
                     anchor_ref, pos_ref, neg_ref, acc_ref):
    c = pl.program_id(0)
    s = pl.program_id(1)

    @pl.when(s == 0)
    def _():
        acc_ref[...] = jnp.zeros_like(acc_ref)

    f32 = jnp.float32
    a = anchor_ref[...].astype(f32)     # (tile, D)
    p = pos_ref[...].astype(f32)
    n = neg_ref[...].astype(f32)

    # cosine sims without materializing normalized copies of the tiles:
    # pos_dot = (a.p) / (max(||a||,1e-12) * max(||p||,1e-12)), etc.
    ssa = jnp.sum(a * a, axis=1, keepdims=True)     # (tile, 1)
    ssp = jnp.sum(p * p, axis=1, keepdims=True)
    ssn = jnp.sum(n * n, axis=1, keepdims=True)
    ap = jnp.sum(a * p, axis=1, keepdims=True)
    an = jnp.sum(a * n, axis=1, keepdims=True)

    inv_a = jax.lax.rsqrt(jnp.maximum(ssa, 1e-24))  # rsqrt -> EUP slot
    inv_p = jax.lax.rsqrt(jnp.maximum(ssp, 1e-24))
    inv_n = jax.lax.rsqrt(jnp.maximum(ssn, 1e-24))
    pos_dot = ap * inv_a * inv_p
    neg_dot = an * inv_a * inv_n

    # -log(exp(pos/tau) / (exp(pos/tau) + exp(neg/tau)))
    #   == softplus((neg - pos)/tau) == -logsigmoid((pos - neg)/tau)
    term = -_log_sigmoid((pos_dot - neg_dot) * inv_tau)     # (tile, 1)

    # mask rows of the (possibly partial / redundant) tile
    row0 = (c * spc + s) * tile
    rid = jax.lax.broadcasted_iota(jnp.int32, (tile, 1), 0) + row0
    term = jnp.where(rid < n_rows, term, 0.0)
    total = jnp.sum(term)

    sub = jax.lax.broadcasted_iota(jnp.int32, acc_ref.shape, 1)
    lane = jax.lax.broadcasted_iota(jnp.int32, acc_ref.shape, 2)
    acc_ref[...] = acc_ref[...] + jnp.where((sub == 0) & (lane == 0), total, 0.0)


def contrast_sum(anchor, pos, neg, tau, n_rows=None):
    """sum_r -log(sim(anchor_r,pos_r) / (sim(anchor_r,pos_r)+sim(anchor_r,neg_r)))."""
    if n_rows is None:
        n_rows = int(anchor.shape[0])
    D = int(anchor.shape[1])
    itemsize = jnp.dtype(anchor.dtype).itemsize

    # Tile sized from the real lane-padded VMEM footprint: each (tile, D)
    # buffer occupies tile * round_up(D,128) * itemsize bytes; keep
    # 3 inputs x 2 pipeline buffers <= ~18 MiB (v7x has 64 MiB physical VMEM,
    # leaving headroom for in-kernel f32 temporaries).
    padded_D = _round_up(D, 128)
    row_bytes = padded_D * itemsize
    tile = (18 << 20) // (6 * row_bytes)
    tile = max(8, (tile // 8) * 8)
    tile = min(tile, _round_up(n_rows, 8))

    n_tiles = pl.cdiv(n_rows, tile)
    n_par = 2 if n_tiles >= 2 else 1           # use both v7x TensorCores
    spc = pl.cdiv(n_tiles, n_par)

    def in_map(c, s):
        # clamp redundant trailing steps to the last valid tile (their
        # contribution is masked to zero by the in-kernel row-id mask)
        t = jnp.minimum(c * spc + s, n_tiles - 1)
        return (t, 0)

    kernel = functools.partial(_contrast_kernel,
                               float(1.0 / tau), int(n_rows), int(tile), int(spc))
    out = pl.pallas_call(
        kernel,
        out_shape=jax.ShapeDtypeStruct((n_par, 8, 128), jnp.float32),
        grid_spec=pltpu.PrefetchScalarGridSpec(
            num_scalar_prefetch=0,
            grid=(n_par, spc),
            in_specs=[pl.BlockSpec((tile, D), in_map)] * 3,
            out_specs=pl.BlockSpec((1, 8, 128), lambda c, s: (c, 0, 0)),
        ),
        compiler_params=pltpu.CompilerParams(
            dimension_semantics=("parallel", "arbitrary"),
            vmem_limit_bytes=48 << 20),
    )(anchor, pos, neg)
    return jnp.sum(out[:, 0, 0])


# ----------------------------------------------------------------------------
# KPRec forward (loss computation) — mirrors KPRec.forward / _object_func.
# ----------------------------------------------------------------------------
def kprec_forward(user_ids, item_ids, neg_item_ids,
                  entity_final_embs, user_final_embs_kg, user_final_embs_cg,
                  item_final_embs_cg, item_attn_final_embs, preference_embs,
                  n_items, l2_decay, cg_decay, cl_decay, tau):
    B = int(user_ids.shape[0])

    # --- Pallas kernel 1: batched BPR / CG-BPR / L2 sums ---
    bpr_sum, cg_sum, reg_sum = batch_loss_sums(
        user_ids, item_ids, neg_item_ids,
        user_final_embs_kg, user_final_embs_cg, preference_embs,
        entity_final_embs, item_final_embs_cg, item_attn_final_embs)
    bpr_loss = bpr_sum / B
    cg_bpr_loss = cg_decay * (cg_sum / B)
    emb_loss = l2_decay * (reg_sum / B)

    # --- Pallas kernel 2: contrastive sums over all items / users ---
    # entity_final_embs is passed un-sliced; only the first n_items rows
    # contribute (tiled grid + in-kernel row mask).
    item_cl = contrast_sum(item_attn_final_embs, item_final_embs_cg,
                           entity_final_embs, tau, n_rows=n_items)
    user_cl = contrast_sum(preference_embs, user_final_embs_cg,
                           user_final_embs_kg, tau)
    cl_loss = cl_decay * (item_cl + user_cl)

    loss = bpr_loss + cg_bpr_loss + cl_loss + emb_loss
    return loss, bpr_loss, cg_bpr_loss, cl_loss, emb_loss


# ----------------------------------------------------------------------------
# pure-JAX reference of _object_func (for the correctness check in __main__)
# ----------------------------------------------------------------------------
def kprec_reference(user_ids, item_ids, neg_item_ids,
                    ent, ukg, ucg, icg, iat, pref,
                    n_items, l2_decay, cg_decay, cl_decay, tau):
    u_kg, u_cg, u_pf = ukg[user_ids], ucg[user_ids], pref[user_ids]
    i_kg, i_cg, i_at = ent[item_ids], icg[item_ids], iat[item_ids]
    n_kg, n_cg, n_at = ent[neg_item_ids], icg[neg_item_ids], iat[neg_item_ids]
    user_total = jnp.concatenate([(u_pf + u_cg) / 2, u_kg], axis=1)
    item_total = jnp.concatenate([(i_cg + i_at) / 2, i_kg], axis=1)
    nitem_total = jnp.concatenate([(n_cg + n_at) / 2, n_kg], axis=1)
    pos = jnp.sum(user_total * item_total, axis=1)
    neg = jnp.sum(user_total * nitem_total, axis=1)
    bpr = -jnp.mean(jax.nn.log_sigmoid(pos - neg))
    pos_cg = jnp.sum(u_cg * i_cg, axis=1)
    neg_cg = jnp.sum(u_cg * n_cg, axis=1)
    cg_bpr = cg_decay * -jnp.mean(jax.nn.log_sigmoid(pos_cg - neg_cg))

    def sim(z1, z2):
        z1 = z1 / jnp.maximum(jnp.linalg.norm(z1, axis=1, keepdims=True), 1e-12)
        z2 = z2 / jnp.maximum(jnp.linalg.norm(z2, axis=1, keepdims=True), 1e-12)
        return jnp.exp(jnp.sum(z1 * z2, axis=1) / tau)

    ips, ins = sim(iat, icg), sim(iat, ent[:n_items])
    ups, uns = sim(pref, ucg), sim(pref, ukg)
    cl = cl_decay * (-jnp.sum(jnp.log(ips / (ips + ins)))
                     - jnp.sum(jnp.log(ups / (ups + uns))))
    reg = 0.5 * (jnp.sum(u_kg ** 2) + jnp.sum(u_cg ** 2) + jnp.sum(i_kg ** 2)
                 + jnp.sum(i_cg ** 2) + jnp.sum(n_kg ** 2) + jnp.sum(n_cg ** 2)
                 + jnp.sum(u_pf ** 2) + jnp.sum(i_at ** 2) + jnp.sum(n_at ** 2))
    emb = l2_decay * (reg / user_ids.shape[0])
    return bpr + cg_bpr + cl + emb, bpr, cg_bpr, cl, emb


def xavier_uniform(key, shape):
    fan_in, fan_out = shape[0], shape[1]
    bound = (6.0 / (fan_in + fan_out)) ** 0.5
    return jax.random.uniform(key, shape, jnp.float32, -bound, bound)


if __name__ == "__main__":
    # small synthetic "dataset" sizes
    n_users, n_items, n_entities = 24, 40, 48
    emb_size = 32
    batch = 8
    l2_decay, cg_decay, cl_decay, tau = 1e-4, 0.1, 0.01, 0.5

    key = jax.random.PRNGKey(0)
    ks = jax.random.split(key, 10)

    # nn.Parameter tables (xavier_uniform, as in __init__)
    user_embs = xavier_uniform(ks[0], (n_users, emb_size))
    entity_embs = xavier_uniform(ks[1], (n_entities, emb_size))

    # TODO(synk): outputs of GraphAggregateLayers (sparse graph aggregation) are
    # not reproducible (class not provided); substitute deterministic tables.
    entity_final_embs = entity_embs
    user_final_embs_kg = user_embs
    user_final_embs_cg = 0.1 * jax.random.normal(ks[2], (n_users, emb_size), jnp.float32)
    item_final_embs_cg = 0.1 * jax.random.normal(ks[3], (n_items, emb_size), jnp.float32)
    item_attn_final_embs = 0.1 * jax.random.normal(ks[4], (n_items, emb_size), jnp.float32)
    preference_embs = 0.1 * jax.random.normal(ks[5], (n_users, emb_size), jnp.float32)

    user_ids = jax.random.randint(ks[6], (batch,), 0, n_users)
    item_ids = jax.random.randint(ks[7], (batch,), 0, n_items)
    neg_item_ids = jax.random.randint(ks[8], (batch,), 0, n_items)

    out = kprec_forward(
        user_ids, item_ids, neg_item_ids,
        entity_final_embs, user_final_embs_kg, user_final_embs_cg,
        item_final_embs_cg, item_attn_final_embs, preference_embs,
        n_items, l2_decay, cg_decay, cl_decay, tau)
    out = jax.block_until_ready(out)

    ref = jax.block_until_ready(kprec_reference(
        user_ids, item_ids, neg_item_ids,
        entity_final_embs, user_final_embs_kg, user_final_embs_cg,
        item_final_embs_cg, item_attn_final_embs, preference_embs,
        n_items, l2_decay, cg_decay, cl_decay, tau))

    for got, want in zip(out, ref):
        assert jnp.allclose(got, want, rtol=2e-4, atol=1e-5), (got, want)

    print("KERNEL_OK")
</pallas_src>

<mosaic_0001>
module attributes {stable_mosaic.version = 11 : i64} {
  func.func @_batch_loss_kernel(%arg0: i32, %arg1: i32, %arg2: memref<8x32xf32, #tpu.memory_space<vmem>>, %arg3: memref<8x32xf32, #tpu.memory_space<vmem>>, %arg4: memref<8x32xf32, #tpu.memory_space<vmem>>, %arg5: memref<8x32xf32, #tpu.memory_space<vmem>>, %arg6: memref<8x32xf32, #tpu.memory_space<vmem>>, %arg7: memref<8x32xf32, #tpu.memory_space<vmem>>, %arg8: memref<8x32xf32, #tpu.memory_space<vmem>>, %arg9: memref<8x32xf32, #tpu.memory_space<vmem>>, %arg10: memref<8x32xf32, #tpu.memory_space<vmem>>, %arg11: memref<1x8x128xf32, #tpu.memory_space<vmem>>) attributes {dimension_semantics = [#tpu.dimension_semantics<parallel>, #tpu.dimension_semantics<arbitrary>], iteration_bounds = array<i64: 1, 1>, scalar_prefetch = 0 : i64, scratch_operands = 0 : i64, tpu.core_type = #tpu.core_type<tc>, window_params = [{transform_indices = @transform_0, window_bounds = array<i64: 8, 32>}, {transform_indices = @transform_1, window_bounds = array<i64: 8, 32>}, {transform_indices = @transform_2, window_bounds = array<i64: 8, 32>}, {transform_indices = @transform_3, window_bounds = array<i64: 8, 32>}, {transform_indices = @transform_4, window_bounds = array<i64: 8, 32>}, {transform_indices = @transform_5, window_bounds = array<i64: 8, 32>}, {transform_indices = @transform_6, window_bounds = array<i64: 8, 32>}, {transform_indices = @transform_7, window_bounds = array<i64: 8, 32>}, {transform_indices = @transform_8, window_bounds = array<i64: 8, 32>}, {transform_indices = @transform_9, window_bounds = array<i64: 1, 8, 128>}]} {
    %c0_i32 = arith.constant 0 : i32
    %0 = arith.cmpi eq, %arg1, %c0_i32 : i32
    %1 = arith.extui %0 : i1 to i32
    %c0_i32_0 = arith.constant 0 : i32
    %2 = arith.cmpi ne, %1, %c0_i32_0 : i32
    scf.if %2 {
      %cst_49 = arith.constant 0.000000e+00 : f32
      %129 = vector.broadcast %cst_49 : f32 to vector<1x8x128xf32>
      %c0_50 = arith.constant 0 : index
      %c0_51 = arith.constant 0 : index
      %c0_52 = arith.constant 0 : index
      %130 = vector.load %arg11[%c0_50, %c0_51, %c0_52] : memref<1x8x128xf32, #tpu.memory_space<vmem>>, vector<1x8x128xf32>
      tpu.vector_store %arg11[%c0_50, %c0_51, %c0_52], %129 {strides = array<i32>} : memref<1x8x128xf32, #tpu.memory_space<vmem>>, vector<1x8x128xf32>,
    } else {
    }
    %c0 = arith.constant 0 : index
    %c0_1 = arith.constant 0 : index
    %3 = vector.load %arg2[%c0, %c0_1] : memref<8x32xf32, #tpu.memory_space<vmem>>, vector<8x32xf32>
    %c0_2 = arith.constant 0 : index
    %c0_3 = arith.constant 0 : index
    %4 = vector.load %arg3[%c0_2, %c0_3] : memref<8x32xf32, #tpu.memory_space<vmem>>, vector<8x32xf32>
    %c0_4 = arith.constant 0 : index
    %c0_5 = arith.constant 0 : index
    %5 = vector.load %arg4[%c0_4, %c0_5] : memref<8x32xf32, #tpu.memory_space<vmem>>, vector<8x32xf32>
    %c0_6 = arith.constant 0 : index
    %c0_7 = arith.constant 0 : index
    %6 = vector.load %arg5[%c0_6, %c0_7] : memref<8x32xf32, #tpu.memory_space<vmem>>, vector<8x32xf32>
    %c0_8 = arith.constant 0 : index
    %c0_9 = arith.constant 0 : index
    %7 = vector.load %arg6[%c0_8, %c0_9] : memref<8x32xf32, #tpu.memory_space<vmem>>, vector<8x32xf32>
    %c0_10 = arith.constant 0 : index
    %c0_11 = arith.constant 0 : index
    %8 = vector.load %arg7[%c0_10, %c0_11] : memref<8x32xf32, #tpu.memory_space<vmem>>, vector<8x32xf32>
    %c0_12 = arith.constant 0 : index
    %c0_13 = arith.constant 0 : index
    %9 = vector.load %arg8[%c0_12, %c0_13] : memref<8x32xf32, #tpu.memory_space<vmem>>, vector<8x32xf32>
    %c0_14 = arith.constant 0 : index
    %c0_15 = arith.constant 0 : index
    %10 = vector.load %arg9[%c0_14, %c0_15] : memref<8x32xf32, #tpu.memory_space<vmem>>, vector<8x32xf32>
    %c0_16 = arith.constant 0 : index
    %c0_17 = arith.constant 0 : index
    %11 = vector.load %arg10[%c0_16, %c0_17] : memref<8x32xf32, #tpu.memory_space<vmem>>, vector<8x32xf32>
    %12 = arith.addf %5, %4 : vector<8x32xf32>
    %cst = arith.constant 5.000000e-01 : f32
    %13 = vector.broadcast %cst : f32 to vector<8x32xf32>
    %14 = arith.mulf %12, %13 : vector<8x32xf32>
    %15 = arith.addf %7, %8 : vector<8x32xf32>
    %cst_18 = arith.constant 5.000000e-01 : f32
    %16 = vector.broadcast %cst_18 : f32 to vector<8x32xf32>
    %17 = arith.mulf %15, %16 : vector<8x32xf32>
    %18 = arith.addf %10, %11 : vector<8x32xf32>
    %cst_19 = arith.constant 5.000000e-01 : f32
    %19 = vector.broadcast %cst_19 : f32 to vector<8x32xf32>
    %20 = arith.mulf %18, %19 : vector<8x32xf32>
    %21 = arith.mulf %14, %17 : vector<8x32xf32>
    %22 = arith.mulf %3, %6 : vector<8x32xf32>
    %23 = arith.addf %21, %22 : vector<8x32xf32>
    %cst_20 = arith.constant dense<0.000000e+00> : vector<8xf32>
    %24 = vector.multi_reduction <add>, %23, %cst_20 [1] : vector<8x32xf32> to vector<8xf32>
    %25 = vector.shape_cast %24 : vector<8xf32> to vector<8x1xf32>
    %26 = arith.mulf %14, %20 : vector<8x32xf32>
    %27 = arith.mulf %3, %9 : vector<8x32xf32>
    %28 = arith.addf %26, %27 : vector<8x32xf32>
    %cst_21 = arith.constant dense<0.000000e+00> : vector<8xf32>
    %29 = vector.multi_reduction <add>, %28, %cst_21 [1] : vector<8x32xf32> to vector<8xf32>
    %30 = vector.shape_cast %29 : vector<8xf32> to vector<8x1xf32>
    %31 = arith.subf %25, %30 : vector<8x1xf32>
    %cst_22 = arith.constant 0.000000e+00 : f32
    %32 = vector.broadcast %cst_22 : f32 to vector<8x1xf32>
    %33 = arith.minimumf %31, %32 : vector<8x1xf32>
    %34 = math.absf %31 : vector<8x1xf32>
    %cst_23 = arith.constant 0.000000e+00 : f32
    %35 = vector.broadcast %cst_23 : f32 to vector<8x1xf32>
    %36 = arith.subf %35, %34 : vector<8x1xf32>
    %37 = math.exp %36 : vector<8x1xf32>
    %38 = math.log1p %37 : vector<8x1xf32>
    %39 = arith.subf %33, %38 : vector<8x1xf32>
    %cst_24 = arith.constant 0.000000e+00 : f32
    %40 = vector.broadcast %cst_24 : f32 to vector<8x1xf32>
    %41 = arith.subf %40, %39 : vector<8x1xf32>
    %42 = arith.mulf %4, %7 : vector<8x32xf32>
    %cst_25 = arith.constant dense<0.000000e+00> : vector<8xf32>
    %43 = vector.multi_reduction <add>, %42, %cst_25 [1] : vector<8x32xf32> to vector<8xf32>
    %44 = vector.shape_cast %43 : vector<8xf32> to vector<8x1xf32>
    %45 = arith.mulf %4, %10 : vector<8x32xf32>
    %cst_26 = arith.constant dense<0.000000e+00> : vector<8xf32>
    %46 = vector.multi_reduction <add>, %45, %cst_26 [1] : vector<8x32xf32> to vector<8xf32>
    %47 = vector.shape_cast %46 : vector<8xf32> to vector<8x1xf32>
    %48 = arith.subf %44, %47 : vector<8x1xf32>
    %cst_27 = arith.constant 0.000000e+00 : f32
    %49 = vector.broadcast %cst_27 : f32 to vector<8x1xf32>
    %50 = arith.minimumf %48, %49 : vector<8x1xf32>
    %51 = math.absf %48 : vector<8x1xf32>
    %cst_28 = arith.constant 0.000000e+00 : f32
    %52 = vector.broadcast %cst_28 : f32 to vector<8x1xf32>
    %53 = arith.subf %52, %51 : vector<8x1xf32>
    %54 = math.exp %53 : vector<8x1xf32>
    %55 = math.log1p %54 : vector<8x1xf32>
    %56 = arith.subf %50, %55 : vector<8x1xf32>
    %cst_29 = arith.constant 0.000000e+00 : f32
    %57 = vector.broadcast %cst_29 : f32 to vector<8x1xf32>
    %58 = arith.subf %57, %56 : vector<8x1xf32>
    %59 = arith.mulf %3, %3 : vector<8x32xf32>
    %60 = arith.mulf %4, %4 : vector<8x32xf32>
    %61 = arith.addf %59, %60 : vector<8x32xf32>
    %62 = arith.mulf %5, %5 : vector<8x32xf32>
    %63 = arith.addf %61, %62 : vector<8x32xf32>
    %64 = arith.mulf %6, %6 : vector<8x32xf32>
    %65 = arith.addf %63, %64 : vector<8x32xf32>
    %66 = arith.mulf %7, %7 : vector<8x32xf32>
    %67 = arith.addf %65, %66 : vector<8x32xf32>
    %68 = arith.mulf %8, %8 : vector<8x32xf32>
    %69 = arith.addf %67, %68 : vector<8x32xf32>
    %70 = arith.mulf %9, %9 : vector<8x32xf32>
    %71 = arith.addf %69, %70 : vector<8x32xf32>
    %72 = arith.mulf %10, %10 : vector<8x32xf32>
    %73 = arith.addf %71, %72 : vector<8x32xf32>
    %74 = arith.mulf %11, %11 : vector<8x32xf32>
    %75 = arith.addf %73, %74 : vector<8x32xf32>
    %cst_30 = arith.constant dense<0.000000e+00> : vector<8xf32>
    %76 = vector.multi_reduction <add>, %75, %cst_30 [1] : vector<8x32xf32> to vector<8xf32>
    %77 = vector.shape_cast %76 : vector<8xf32> to vector<8x1xf32>
    %cst_31 = arith.constant 5.000000e-01 : f32
    %78 = vector.broadcast %cst_31 : f32 to vector<8x1xf32>
    %79 = arith.mulf %78, %77 : vector<8x1xf32>
    %c1_i32 = arith.constant 1 : i32
    %80 = arith.muli %arg0, %c1_i32 : i32
    %81 = arith.addi %80, %arg1 : i32
    %c8_i32 = arith.constant 8 : i32
    %82 = arith.muli %81, %c8_i32 : i32
    %83 = tpu.iota {dimensions = array<i32: 0>} : vector<8x1xi32>
    %84 = vector.broadcast %82 : i32 to vector<8x1xi32>
    %85 = arith.addi %83, %84 : vector<8x1xi32>
    %c8_i32_32 = arith.constant 8 : i32
    %86 = vector.broadcast %c8_i32_32 : i32 to vector<8x1xi32>
    %87 = arith.cmpi slt, %85, %86 : vector<8x1xi32>
    %cst_33 = arith.constant 0.000000e+00 : f32
    %88 = vector.broadcast %cst_33 : f32 to vector<8x1xf32>
    %89 = arith.select %87, %41, %88 : vector<8x1xi1>, vector<8x1xf32>
    %90 = vector.shape_cast %89 : vector<8x1xf32> to vector<1x8x1xf32>
    %cst_34 = arith.constant dense<0.000000e+00> : vector<1xf32>
    %91 = vector.multi_reduction <add>, %90, %cst_34 [1, 2] : vector<1x8x1xf32> to vector<1xf32>
    %92 = vector.shape_cast %91 : vector<1xf32> to vector<1x1x1xf32>
    %93 = vector.extract %92[0, 0, 0] : f32 from vector<1x1x1xf32>
    %cst_35 = arith.constant 0.000000e+00 : f32
    %94 = vector.broadcast %cst_35 : f32 to vector<8x1xf32>
    %95 = arith.select %87, %58, %94 : vector<8x1xi1>, vector<8x1xf32>
    %96 = vector.shape_cast %95 : vector<8x1xf32> to vector<1x8x1xf32>
    %cst_36 = arith.constant dense<0.000000e+00> : vector<1xf32>
    %97 = vector.multi_reduction <add>, %96, %cst_36 [1, 2] : vector<1x8x1xf32> to vector<1xf32>
    %98 = vector.shape_cast %97 : vector<1xf32> to vector<1x1x1xf32>
    %99 = vector.extract %98[0, 0, 0] : f32 from vector<1x1x1xf32>
    %cst_37 = arith.constant 0.000000e+00 : f32
    %100 = vector.broadcast %cst_37 : f32 to vector<8x1xf32>
    %101 = arith.select %87, %79, %100 : vector<8x1xi1>, vector<8x1xf32>
    %102 = vector.shape_cast %101 : vector<8x1xf32> to vector<1x8x1xf32>
    %cst_38 = arith.constant dense<0.000000e+00> : vector<1xf32>
    %103 = vector.multi_reduction <add>, %102, %cst_38 [1, 2] : vector<1x8x1xf32> to vector<1xf32>
    %104 = vector.shape_cast %103 : vector<1xf32> to vector<1x1x1xf32>
    %105 = vector.extract %104[0, 0, 0] : f32 from vector<1x1x1xf32>
    %106 = tpu.iota {dimensions = array<i32: 1>} : vector<1x8x128xi32>
    %107 = tpu.iota {dimensions = array<i32: 2>} : vector<1x8x128xi32>
    %c0_i32_39 = arith.constant 0 : i32
    %108 = vector.broadcast %c0_i32_39 : i32 to vector<1x8x128xi32>
    %109 = arith.cmpi eq, %106, %108 : vector<1x8x128xi32>
    %c0_i32_40 = arith.constant 0 : i32
    %110 = vector.broadcast %c0_i32_40 : i32 to vector<1x8x128xi32>
    %111 = arith.cmpi eq, %107, %110 : vector<1x8x128xi32>
    %112 = arith.andi %109, %111 : vector<1x8x128xi1>
    %c1_i32_41 = arith.constant 1 : i32
    %113 = vector.broadcast %c1_i32_41 : i32 to vector<1x8x128xi32>
    %114 = arith.cmpi eq, %107, %113 : vector<1x8x128xi32>
    %115 = arith.andi %109, %114 : vector<1x8x128xi1>
    %c2_i32 = arith.constant 2 : i32
    %116 = vector.broadcast %c2_i32 : i32 to vector<1x8x128xi32>
    %117 = arith.cmpi eq, %107, %116 : vector<1x8x128xi32>
    %118 = arith.andi %109, %117 : vector<1x8x128xi1>
    %cst_42 = arith.constant 0.000000e+00 : f32
    %119 = vector.broadcast %105 : f32 to vector<1x8x128xf32>
    %120 = vector.broadcast %cst_42 : f32 to vector<1x8x128xf32>
    %121 = arith.select %118, %119, %120 : vector<1x8x128xi1>, vector<1x8x128xf32>
    %122 = vector.broadcast %99 : f32 to vector<1x8x128xf32>
    %123 = arith.select %115, %122, %121 : vector<1x8x128xi1>, vector<1x8x128xf32>
    %124 = vector.broadcast %93 : f32 to vector<1x8x128xf32>
    %125 = arith.select %112, %124, %123 : vector<1x8x128xi1>, vector<1x8x128xf32>
    %c0_43 = arith.constant 0 : index
    %c0_44 = arith.constant 0 : index
    %c0_45 = arith.constant 0 : index
    %126 = vector.load %arg11[%c0_43, %c0_44, %c0_45] : memref<1x8x128xf32, #tpu.memory_space<vmem>>, vector<1x8x128xf32>
    %127 = arith.addf %126, %125 : vector<1x8x128xf32>
    %c0_46 = arith.constant 0 : index
    %c0_47 = arith.constant 0 : index
    %c0_48 = arith.constant 0 : index
    %128 = vector.load %arg11[%c0_46, %c0_47, %c0_48] : memref<1x8x128xf32, #tpu.memory_space<vmem>>, vector<1x8x128xf32>
    tpu.vector_store %arg11[%c0_46, %c0_47, %c0_48], %127 {strides = array<i32>} : memref<1x8x128xf32, #tpu.memory_space<vmem>>, vector<1x8x128xf32>,
    return
  }
  func.func @transform_0(%arg0: i32, %arg1: i32) -> (i32, i32) {
    %c1_i32 = arith.constant 1 : i32
    %0 = arith.muli %arg0, %c1_i32 : i32
    %1 = arith.addi %0, %arg1 : i32
    %c0_i32 = arith.constant 0 : i32
    %c0_i32_0 = arith.constant 0 : i32
    return %1, %c0_i32 : i32, i32
  }
  func.func @transform_1(%arg0: i32, %arg1: i32) -> (i32, i32) {
    %c1_i32 = arith.constant 1 : i32
    %0 = arith.muli %arg0, %c1_i32 : i32
    %1 = arith.addi %0, %arg1 : i32
    %c0_i32 = arith.constant 0 : i32
    %c0_i32_0 = arith.constant 0 : i32
    return %1, %c0_i32 : i32, i32
  }
  func.func @transform_2(%arg0: i32, %arg1: i32) -> (i32, i32) {
    %c1_i32 = arith.constant 1 : i32
    %0 = arith.muli %arg0, %c1_i32 : i32
    %1 = arith.addi %0, %arg1 : i32
    %c0_i32 = arith.constant 0 : i32
    %c0_i32_0 = arith.constant 0 : i32
    return %1, %c0_i32 : i32, i32
  }
  func.func @transform_3(%arg0: i32, %arg1: i32) -> (i32, i32) {
    %c1_i32 = arith.constant 1 : i32
    %0 = arith.muli %arg0, %c1_i32 : i32
    %1 = arith.addi %0, %arg1 : i32
    %c0_i32 = arith.constant 0 : i32
    %c0_i32_0 = arith.constant 0 : i32
    return %1, %c0_i32 : i32, i32
  }
  func.func @transform_4(%arg0: i32, %arg1: i32) -> (i32, i32) {
    %c1_i32 = arith.constant 1 : i32
    %0 = arith.muli %arg0, %c1_i32 : i32
    %1 = arith.addi %0, %arg1 : i32
    %c0_i32 = arith.constant 0 : i32
    %c0_i32_0 = arith.constant 0 : i32
    return %1, %c0_i32 : i32, i32
  }
  func.func @transform_5(%arg0: i32, %arg1: i32) -> (i32, i32) {
    %c1_i32 = arith.constant 1 : i32
    %0 = arith.muli %arg0, %c1_i32 : i32
    %1 = arith.addi %0, %arg1 : i32
    %c0_i32 = arith.constant 0 : i32
    %c0_i32_0 = arith.constant 0 : i32
    return %1, %c0_i32 : i32, i32
  }
  func.func @transform_6(%arg0: i32, %arg1: i32) -> (i32, i32) {
    %c1_i32 = arith.constant 1 : i32
    %0 = arith.muli %arg0, %c1_i32 : i32
    %1 = arith.addi %0, %arg1 : i32
    %c0_i32 = arith.constant 0 : i32
    %c0_i32_0 = arith.constant 0 : i32
    return %1, %c0_i32 : i32, i32
  }
  func.func @transform_7(%arg0: i32, %arg1: i32) -> (i32, i32) {
    %c1_i32 = arith.constant 1 : i32
    %0 = arith.muli %arg0, %c1_i32 : i32
    %1 = arith.addi %0, %arg1 : i32
    %c0_i32 = arith.constant 0 : i32
    %c0_i32_0 = arith.constant 0 : i32
    return %1, %c0_i32 : i32, i32
  }
  func.func @transform_8(%arg0: i32, %arg1: i32) -> (i32, i32) {
    %c1_i32 = arith.constant 1 : i32
    %0 = arith.muli %arg0, %c1_i32 : i32
    %1 = arith.addi %0, %arg1 : i32
    %c0_i32 = arith.constant 0 : i32
    %c0_i32_0 = arith.constant 0 : i32
    return %1, %c0_i32 : i32, i32
  }
  func.func @transform_9(%arg0: i32, %arg1: i32) -> (i32, i32, i32) {
    %c0_i32 = arith.constant 0 : i32
    %c0_i32_0 = arith.constant 0 : i32
    %c0_i32_1 = arith.constant 0 : i32
    return %arg0, %c0_i32, %c0_i32_0 : i32, i32, i32
  }
}

</mosaic_0001>

<llo_original>
// kernel: tpu_custom_call.1
$region0: #{tpu_custom_call.1}
  #allocation0 [shape = 'u32[]', space=smem, size = 0x4, offset = 0x4, fixed_abs, tag = 'smem constant byte address 0x4 - core index']
  #allocation1 [shape = 'u32[144,128]{1,0:T(1,128)}', space=vmem, size = 0x12000, scoped, tag = 'internal scratch']
  %s0 = inlined_call_operand.hbm [shape: f32[8,32], index: 0, kind: input, shape index: {}]
  %s1 = inlined_call_operand.hbm [shape: f32[8,32], index: 1, kind: input, shape index: {}]
  %s2 = inlined_call_operand.hbm [shape: f32[8,32], index: 2, kind: input, shape index: {}]
  %s3 = inlined_call_operand.vmem [shape: f32[8,32], index: 3, kind: input, shape index: {}]
  %s4 = inlined_call_operand.hbm [shape: f32[8,32], index: 4, kind: input, shape index: {}]
  %s5 = inlined_call_operand.vmem [shape: f32[8,32], index: 5, kind: input, shape index: {}]
  %s6 = inlined_call_operand.hbm [shape: f32[8,32], index: 6, kind: input, shape index: {}]
  %s7 = inlined_call_operand.vmem [shape: f32[8,32], index: 7, kind: input, shape index: {}]
  %s8 = inlined_call_operand.hbm [shape: f32[8,32], index: 8, kind: input, shape index: {}]
  %s9 = inlined_call_operand.hbm [shape: f32[1,8,128], index: 9, kind: output, shape index: {}]
  %s10 = sld [smem:[#allocation0]]
  $region74: #{tpu_custom_call.1} parent=0
    _
  %s12 = ssub.s32 1, %s10
  %s13 = scalar_select 0, %s12, %s10
  $region1: #{tpu_custom_call.1} parent=0
    #allocation2 [shape = 'u8[4096]{0}', space=vmem, size = 0x1000, scoped, tag = 'input window, operand 0, single buffered']
    #allocation3 [shape = 's32[1]{0}', space=sflag, size = 0x4, scoped, tag = 'scoped memory for tpu_custom_call.1']
    #allocation4 [shape = 's32[1]{0}', space=sflag, size = 0x4, scoped, tag = 'scoped memory for tpu_custom_call.1']
    #allocation5 [shape = 'u8[4096]{0}', space=vmem, size = 0x1000, scoped, tag = 'input window, operand 1, single buffered']
    #allocation6 [shape = 's32[1]{0}', space=sflag, size = 0x4, scoped, tag = 'scoped memory for tpu_custom_call.1']
    #allocation7 [shape = 'u8[4096]{0}', space=vmem, size = 0x1000, scoped, tag = 'input window, operand 2, single buffered']
    #allocation8 [shape = 'u8[4096]{0}', space=vmem, size = 0x1000, scoped, tag = 'input window, operand 4, single buffered']
    #allocation9 [shape = 's32[1]{0}', space=sflag, size = 0x4, scoped, tag = 'scoped memory for tpu_custom_call.1']
    #allocation10 [shape = 'u8[4096]{0}', space=vmem, size = 0x1000, scoped, tag = 'input window, operand 6, single buffered']
    #allocation11 [shape = 'u8[4096]{0}', space=vmem, size = 0x1000, scoped, tag = 'input window, operand 8, single buffered']
    #allocation12 [shape = 's32[1]{0}', space=sflag, size = 0x4, scoped, tag = 'scoped memory for tpu_custom_call.1']
    #allocation13 [shape = 'u8[4096]{0}', space=vmem, size = 0x1000, scoped, tag = 'output window, operand 0, single buffered']
    %14 = vsyncpa [#allocation3], 0
    %15 = vsyncpa [#allocation6], 0
    %16 = vsyncpa [#allocation9], 0
    %17 = vsyncpa [#allocation12], 0
    %18 = vsyncpa [#allocation4], 0
    // Predicated region
    $region2: #{tpu_custom_call.1} parent=1 // pred_check
      _
    $region3: #{tpu_custom_call.1} parent=1 // pred_check_branch
      %20 = sbr.rel (0) target = $region5
    $region4: #{tpu_custom_call.1} parent=1 // pred_region
      %s21 = sadd.s32 0, 0
      %s23 = ssub.s32 128, 128
      %24 = vsyncadd [#allocation3], %s23
      %s25 = smul.addr %s21, 128
      %s26 = scalar_lea.hbm %s0, %s25
      %s28 = sshll.u32 [#allocation2], 4
      %s29 = int_to_ptr.vmem [resolvable:$true] %s28
      %31 = dma.hbm_to_vmem [thread:$0]  %s26, 128, %s29, [#allocation3]
    $region5: #{tpu_custom_call.1} parent=1 // pred_fallthru
      _
    // Predicated region
    $region6: #{tpu_custom_call.1} parent=1 // pred_check
      _
    $region7: #{tpu_custom_call.1} parent=1 // pred_check_branch
      %33 = sbr.rel (0) target = $region9
    $region8: #{tpu_custom_call.1} parent=1 // pred_region
      %s34 = sadd.s32 0, 0
      %s36 = ssub.s32 128, 128
      %37 = vsyncadd [#allocation6], %s36
      %s38 = smul.addr %s34, 128
      %s39 = scalar_lea.hbm %s1, %s38
      %s41 = sshll.u32 [#allocation5], 4
      %s42 = int_to_ptr.vmem [resolvable:$true] %s41
      %44 = dma.hbm_to_vmem [thread:$0]  %s39, 128, %s42, [#allocation6]
    $region9: #{tpu_custom_call.1} parent=1 // pred_fallthru
      _
    // Predicated region
    $region10: #{tpu_custom_call.1} parent=1 // pred_check
      _
    $region11: #{tpu_custom_call.1} parent=1 // pred_check_branch
      %46 = sbr.rel (0) target = $region13
    $region12: #{tpu_custom_call.1} parent=1 // pred_region
      %s47 = sadd.s32 0, 0
      %s49 = ssub.s32 128, 128
      %50 = vsyncadd [#allocation6], %s49
      %s51 = smul.addr %s47, 128
      %s52 = scalar_lea.hbm %s2, %s51
      %s54 = sshll.u32 [#allocation7], 4
      %s55 = int_to_ptr.vmem [resolvable:$true] %s54
      %57 = dma.hbm_to_vmem [thread:$0]  %s52, 128, %s55, [#allocation6]
    $region13: #{tpu_custom_call.1} parent=1 // pred_fallthru
      _
    // Predicated region
    $region14: #{tpu_custom_call.1} parent=1 // pred_check
      _
    $region15: #{tpu_custom_call.1} parent=1 // pred_check_branch
      %59 = sbr.rel (0) target = $region17
    $region16: #{tpu_custom_call.1} parent=1 // pred_region
      %s60 = sadd.s32 0, 0
      %p61 = scmp.lt.s32.totalorder %s60, 0
      %s62 = scalar_select %p61, %s60, 0
      %s63 = smul.addr %s62, 8
      %s64 = scalar_lea.vmem %s3, %s63
      %s65 = sadd.s32 0, 0
    $region17: #{tpu_custom_call.1} parent=1 // pred_fallthru
      _
    // Predicated region
    $region18: #{tpu_custom_call.1} parent=1 // pred_check
      _
    $region19: #{tpu_custom_call.1} parent=1 // pred_check_branch
      %67 = sbr.rel (0) target = $region21
    $region20: #{tpu_custom_call.1} parent=1 // pred_region
      %s68 = sadd.s32 0, 0
      %s70 = ssub.s32 128, 128
      %71 = vsyncadd [#allocation9], %s70
      %s72 = smul.addr %s68, 128
      %s73 = scalar_lea.hbm %s4, %s72
      %s75 = sshll.u32 [#allocation8], 4
      %s76 = int_to_ptr.vmem [resolvable:$true] %s75
      %78 = dma.hbm_to_vmem [thread:$0]  %s73, 128, %s76, [#allocation9]
    $region21: #{tpu_custom_call.1} parent=1 // pred_fallthru
      _
    // Predicated region
    $region22: #{tpu_custom_call.1} parent=1 // pred_check
      _
    $region23: #{tpu_custom_call.1} parent=1 // pred_check_branch
      %80 = sbr.rel (0) target = $region25
    $region24: #{tpu_custom_call.1} parent=1 // pred_region
      %s81 = sadd.s32 0, 0
      %p82 = scmp.lt.s32.totalorder %s81, 0
      %s83 = scalar_select %p82, %s81, 0
      %s84 = smul.addr %s83, 8
      %s85 = scalar_lea.vmem %s5, %s84
      %s86 = sadd.s32 0, 0
    $region25: #{tpu_custom_call.1} parent=1 // pred_fallthru
      _
    // Predicated region
    $region26: #{tpu_custom_call.1} parent=1 // pred_check
      _
    $region27: #{tpu_custom_call.1} parent=1 // pred_check_branch
      %88 = sbr.rel (0) target = $region29
    $region28: #{tpu_custom_call.1} parent=1 // pred_region
      %s89 = sadd.s32 0, 0
      %s91 = ssub.s32 128, 128
      %92 = vsyncadd [#allocation9], %s91
      %s93 = smul.addr %s89, 128
      %s94 = scalar_lea.hbm %s6, %s93
      %s96 = sshll.u32 [#allocation10], 4
      %s97 = int_to_ptr.vmem [resolvable:$true] %s96
      %99 = dma.hbm_to_vmem [thread:$0]  %s94, 128, %s97, [#allocation9]
    $region29: #{tpu_custom_call.1} parent=1 // pred_fallthru
      _
    // Predicated region
    $region30: #{tpu_custom_call.1} parent=1 // pred_check
      _
    $region31: #{tpu_custom_call.1} parent=1 // pred_check_branch
      %101 = sbr.rel (0) target = $region33
    $region32: #{tpu_custom_call.1} parent=1 // pred_region
      %s102 = sadd.s32 0, 0
      %p103 = scmp.lt.s32.totalorder %s102, 0
      %s104 = scalar_select %p103, %s102, 0
      %s105 = smul.addr %s104, 8
      %s106 = scalar_lea.vmem %s7, %s105
      %s107 = sadd.s32 0, 0
    $region33: #{tpu_custom_call.1} parent=1 // pred_fallthru
      _
    // Predicated region
    $region34: #{tpu_custom_call.1} parent=1 // pred_check
      _
    $region35: #{tpu_custom_call.1} parent=1 // pred_check_branch
      %109 = sbr.rel (0) target = $region37
    $region36: #{tpu_custom_call.1} parent=1 // pred_region
      %s110 = sadd.s32 0, 0
      %s112 = ssub.s32 128, 128
      %113 = vsyncadd [#allocation12], %s112
      %s114 = smul.addr %s110, 128
      %s115 = scalar_lea.hbm %s8, %s114
      %s117 = sshll.u32 [#allocation11], 4
      %s118 = int_to_ptr.vmem [resolvable:$true] %s117
      %120 = dma.hbm_to_vmem [thread:$0]  %s115, 128, %s118, [#allocation12]
    $region37: #{tpu_custom_call.1} parent=1 // pred_fallthru
      _
    // Predicated region
    $region38: #{tpu_custom_call.1} parent=1 // pred_check
      _
    $region39: #{tpu_custom_call.1} parent=1 // pred_check_branch
      %122 = sbr.rel (0) target = $region41
    $region40: #{tpu_custom_call.1} parent=1 // pred_region
      %123 = dma.done [#allocation3], 128
    $region41: #{tpu_custom_call.1} parent=1 // pred_fallthru
      _
    // Predicated region
    $region42: #{tpu_custom_call.1} parent=1 // pred_check
      _
    $region43: #{tpu_custom_call.1} parent=1 // pred_check_branch
      %125 = sbr.rel (0) target = $region45
    $region44: #{tpu_custom_call.1} parent=1 // pred_region
      %126 = dma.done [#allocation6], 128
    $region45: #{tpu_custom_call.1} parent=1 // pred_fallthru
      _
    // Predicated region
    $region46: #{tpu_custom_call.1} parent=1 // pred_check
      _
    $region47: #{tpu_custom_call.1} parent=1 // pred_check_branch
      %128 = sbr.rel (0) target = $region49
    $region48: #{tpu_custom_call.1} parent=1 // pred_region
      %129 = dma.done [#allocation6], 128
    $region49: #{tpu_custom_call.1} parent=1 // pred_fallthru
      _
    // Predicated region
    $region50: #{tpu_custom_call.1} parent=1 // pred_check
      _
    $region51: #{tpu_custom_call.1} parent=1 // pred_check_branch
      %131 = sbr.rel (0) target = $region53
    $region52: #{tpu_custom_call.1} parent=1 // pred_region
      %132 = dma.done [#allocation9], 128
    $region53: #{tpu_custom_call.1} parent=1 // pred_fallthru
      _
    // Predicated region
    $region54: #{tpu_custom_call.1} parent=1 // pred_check
      _
    $region55: #{tpu_custom_call.1} parent=1 // pred_check_branch
      %134 = sbr.rel (0) target = $region57
    $region56: #{tpu_custom_call.1} parent=1 // pred_region
      %135 = dma.done [#allocation9], 128
    $region57: #{tpu_custom_call.1} parent=1 // pred_fallthru
      _
    // Predicated region
    $region58: #{tpu_custom_call.1} parent=1 // pred_check
      _
    $region59: #{tpu_custom_call.1} parent=1 // pred_check_branch
      %137 = sbr.rel (0) target = $region61
    $region60: #{tpu_custom_call.1} parent=1 // pred_region
      %138 = dma.done [#allocation12], 128
    $region61: #{tpu_custom_call.1} parent=1 // pred_fallthru
      _
    %s139 = sadd.s32 0, 0
    %p140 = scmp.lt.s32.totalorder %s139, 0
    %s141 = scalar_select %p140, %s139, 0
    %s142 = smul.addr %s141, 8
    %s143 = scalar_lea.vmem %s3, %s142
    %s144 = sadd.s32 0, 0
    %p145 = scmp.lt.s32.totalorder %s144, 0
    %s146 = scalar_select %p145, %s144, 0
    %s147 = smul.addr %s146, 8
    %s148 = scalar_lea.vmem %s5, %s147
    %s149 = sadd.s32 0, 0
    %p150 = scmp.lt.s32.totalorder %s149, 0
    %s151 = scalar_select %p150, %s149, 0
    %s152 = smul.addr %s151, 8
    %s153 = scalar_lea.vmem %s7, %s152
    %s154 = sadd.s32 0, 0
    %s155 = sadd.s32 0, 0
    %s156 = sadd.s32 0, 0
    %s157 = sadd.s32 0, 0
    %p158 = scmp.lt.s32.totalorder %s157, 0
    %s159 = scalar_select %p158, %s157, 0
    %s160 = smul.addr %s159, 8
    %s161 = scalar_lea.vmem %s3, %s160
    %s162 = sadd.s32 0, 0
    %s163 = sadd.s32 0, 0
    %s164 = sadd.s32 0, 0
    %p165 = scmp.lt.s32.totalorder %s164, 0
    %s166 = scalar_select %p165, %s164, 0
    %s167 = smul.addr %s166, 8
    %s168 = scalar_lea.vmem %s5, %s167
    %s169 = sadd.s32 0, 0
    %s170 = sadd.s32 0, 0
    %s171 = sadd.s32 0, 0
    %p172 = scmp.lt.s32.totalorder %s171, 0
    %s173 = scalar_select %p172, %s171, 0
    %s174 = smul.addr %s173, 8
    %s175 = scalar_lea.vmem %s7, %s174
    %s176 = sadd.s32 0, 0
    %s177 = sadd.s32 0, 0
    %p178 = scmp.eq.s32.totalorder 0, 0
    // Predicated region
    $region62: #{tpu_custom_call.1} parent=1 // pred_check
      %p179 = pneg %p178
    $region63: #{tpu_custom_call.1} parent=1 // pred_check_branch
      %181 = sbr.rel (%p179) target = $region65
    $region64: #{tpu_custom_call.1} parent=1 // pred_region
      %182 = vst [vmem:[#allocation13] sm:$0xff] 0.0
    $region65: #{tpu_custom_call.1} parent=1 // pred_fallthru
      _
    %v183 = vld [vmem:[#allocation2] sm:$0xff]
    %v184 = vld [vmem:[#allocation5] sm:$0xff]
    %v185 = vld [vmem:[#allocation7] sm:$0xff]
    %v186 = vld [vmem:[%s161] sm:$0xff]
    %v187 = vld [vmem:[#allocation8] sm:$0xff]
    %v188 = vld [vmem:[%s168] sm:$0xff]
    %v189 = vld [vmem:[#allocation10] sm:$0xff]
    %v190 = vld [vmem:[%s175] sm:$0xff]
    %v191 = vld [vmem:[#allocation11] sm:$0xff]
    %v192 = vadd.f32 %v185, %v184
    %v193 = vmul.f32 %v192, 0.5
    %v194 = vadd.f32 %v187, %v188
    %v195 = vmul.f32 %v194, 0.5
    %v196 = vadd.f32 %v190, %v191
    %v197 = vmul.f32 %v196, 0.5
    %v198 = vmul.f32 %v193, %v195
    %v199 = vmul.f32 %v183, %v186
    %v200 = vadd.f32 %v198, %v199
    %vm201 = vcmask 261120
    %v202 = vsel %vm201, %v200, 0.0
    %203 = vadd.xlane.f32.xlu0 %v202
    %v204 = vpop.xlane.xlu0 %203
    %v205 = vmul.f32 %v193, %v197
    %v206 = vmul.f32 %v183, %v189
    %v207 = vadd.f32 %v205, %v206
    %v208 = vsel %vm201, %v207, 0.0
    %209 = vadd.xlane.f32.xlu0 %v208
    %v210 = vpop.xlane.xlu0 %209
    %v211 = vsub.f32 %v204, %v210
    %v212 = vmin.f32 %v211, 0.0
    %v213 = vand.u32 2147483647, %v211
    %v214 = vsub.f32 0.0, %v213
    %v215 = vmul.f32 %v214, 1.442695
    %v216 = vpow.pop %v215
    %v217 = vadd.f32 %v216, 1.0
    %v218 = vlog2.pop %v217
    %v219 = vmul.f32 %v218, 0.6931472
    %v220 = vmul.f32 -0.5, %v216
    %v221 = vadd.f32 %v220, 1.0
    %v222 = vmul.f32 %v221, %v216
    %v223 = vand.u32 2147483647, %v216
    %vm224 = vcmp.lt.f32.partialorder %v223, 0.0004427343
    %v225 = vsel %vm224, %v222, %v219
    %v226 = vsub.f32 %v212, %v225
    %v227 = vsub.f32 0.0, %v226
    %v228 = vmul.f32 %v184, %v187
    %v229 = vsel %vm201, %v228, 0.0
    %230 = vadd.xlane.f32.xlu0 %v229
    %v231 = vpop.xlane.xlu0 %230
    %v232 = vmul.f32 %v184, %v190
    %v233 = vsel %vm201, %v232, 0.0
    %234 = vadd.xlane.f32.xlu0 %v233
    %v235 = vpop.xlane.xlu0 %234
    %v236 = vsub.f32 %v231, %v235
    %v237 = vmin.f32 %v236, 0.0
    %v238 = vand.u32 2147483647, %v236
    %v239 = vsub.f32 0.0, %v238
    %v240 = vmul.f32 %v239, 1.442695
    %v241 = vpow.pop %v240
    %v242 = vadd.f32 %v241, 1.0
    %v243 = vlog2.pop %v242
    %v244 = vmul.f32 %v243, 0.6931472
    %v245 = vmul.f32 -0.5, %v241
    %v246 = vadd.f32 %v245, 1.0
    %v247 = vmul.f32 %v246, %v241
    %v248 = vand.u32 2147483647, %v241
    %vm249 = vcmp.lt.f32.partialorder %v248, 0.0004427343
    %v250 = vsel %vm249, %v247, %v244
    %v251 = vsub.f32 %v237, %v250
    %v252 = vsub.f32 0.0, %v251
    %v253 = vmul.f32 %v183, %v183
    %v254 = vmul.f32 %v184, %v184
    %v255 = vadd.f32 %v253, %v254
    %v256 = vmul.f32 %v185, %v185
    %v257 = vadd.f32 %v255, %v256
    %v258 = vmul.f32 %v186, %v186
    %v259 = vadd.f32 %v257, %v258
    %v260 = vmul.f32 %v187, %v187
    %v261 = vadd.f32 %v259, %v260
    %v262 = vmul.f32 %v188, %v188
    %v263 = vadd.f32 %v261, %v262
    %v264 = vmul.f32 %v189, %v189
    %v265 = vadd.f32 %v263, %v264
    %v266 = vmul.f32 %v190, %v190
    %v267 = vadd.f32 %v265, %v266
    %v268 = vmul.f32 %v191, %v191
    %v269 = vadd.f32 %v267, %v268
    %v270 = vsel %vm201, %v269, 0.0
    %271 = vadd.xlane.f32.xlu0 %v270
    %v272 = vpop.xlane.xlu0 %271
    %v273 = vmul.f32 %v272, 0.5
    %s274 = sadd.s32 0, 0
    %s275 = smul.u32 %s274, 8
    %v276 = vlaneseq
    %v277 = vshrl.u32 %v276, 7
    %v278 = vstv %s275
    %v279 = vadd.s32 %v277, %v278
    %vm280 = vcmp.lt.s32.totalorder %v279, 8
    %v281 = vsel %vm280, %v227, 0.0
    %vm282 = vcmask 7168
    %v283 = vsel %vm282, %v281, 0.0
    %284 = vadd.xlane.f32.xlu0 %v283
    %v285 = vpop.xlane.xlu0 %284
    %v286 = vrot.slane %v285, 4
    %v287 = vadd.f32 %v285, %v286
    %v288 = vrot.slane %v287, 2
    %v289 = vadd.f32 %v287, %v288
    %v290 = vrot.slane %v289, 1
    %v291 = vadd.f32 %v289, %v290
    %s292 = vtos %v291
    %v293 = vsel %vm280, %v252, 0.0
    %v294 = vsel %vm282, %v293, 0.0
    %295 = vadd.xlane.f32.xlu0 %v294
    %v296 = vpop.xlane.xlu0 %295
    %v297 = vrot.slane %v296, 4
    %v298 = vadd.f32 %v296, %v297
    %v299 = vrot.slane %v298, 2
    %v300 = vadd.f32 %v298, %v299
    %v301 = vrot.slane %v300, 1
    %v302 = vadd.f32 %v300, %v301
    %s303 = vtos %v302
    %v304 = vsel %vm280, %v273, 0.0
    %v305 = vsel %vm282, %v304, 0.0
    %306 = vadd.xlane.f32.xlu0 %v305
    %v307 = vpop.xlane.xlu0 %306
    %v308 = vrot.slane %v307, 4
    %v309 = vadd.f32 %v307, %v308
    %v310 = vrot.slane %v309, 2
    %v311 = vadd.f32 %v309, %v310
    %v312 = vrot.slane %v311, 1
    %v313 = vadd.f32 %v311, %v312
    %s314 = vtos %v313
    %v315 = vlaneseq
    %v316 = vand.u32 %v315, 127
    %vm317 = vcmp.eq.s32.totalorder %v277, 0
    %vm318 = vcmp.eq.s32.totalorder %v316, 0
    %vm319 = vmand %vm317, %vm318
    %vm320 = vcmp.eq.s32.totalorder %v316, 1
    %vm321 = vmand %vm317, %vm320
    %vm322 = vcmp.eq.s32.totalorder %v316, 2
    %vm323 = vmand %vm317, %vm322
    %v324 = vstv %s314
    %v325 = vsel %vm323, %v324, 0.0
    %v326 = vstv %s303
    %v327 = vsel %vm321, %v326, %v325
    %v328 = vstv %s292
    %v329 = vsel %vm319, %v328, %v327
    %v330 = vld [vmem:[#allocation13] sm:$0xff]
    %v331 = vadd.f32 %v330, %v329
    %332 = vst [vmem:[#allocation13] sm:$0xff] %v331
    // Predicated region
    $region66: #{tpu_custom_call.1} parent=1 // pred_check
      _
    $region67: #{tpu_custom_call.1} parent=1 // pred_check_branch
      %334 = sbr.rel (0) target = $region69
    $region68: #{tpu_custom_call.1} parent=1 // pred_region
      %s336 = ssub.s32 128, 128
      %337 = vsyncadd [#allocation4], %s336
      %s339 = sshll.u32 [#allocation13], 4
      %s340 = int_to_ptr.vmem [resolvable:$true] %s339
      %342 = dma.vmem_to_hbm [thread:$0]  %s340, 128, %s9, [#allocation4]
    $region69: #{tpu_custom_call.1} parent=1 // pred_fallthru
      _
    // Predicated region
    $region70: #{tpu_custom_call.1} parent=1 // pred_check
      _
    $region71: #{tpu_custom_call.1} parent=1 // pred_check_branch
      %344 = sbr.rel (0) target = $region73
    $region72: #{tpu_custom_call.1} parent=1 // pred_region
      %345 = dma.done [#allocation4], 128
    $region73: #{tpu_custom_call.1} parent=1 // pred_fallthru
      _
    %346 = vsyncpa [#allocation3], 1
    %347 = vsyncpa [#allocation6], 1
    %348 = vsyncpa [#allocation9], 1
    %349 = vsyncpa [#allocation12], 1
    %350 = vsyncpa [#allocation4], 1

</llo_original>
